<compile_context>
chip_gen: v7x
topology: tpu7x:2x2x1
jax: 0.10.0
libtpu: 0.0.40
codegen_flags: <defaults>
</compile_context>

<pallas_src>
import functools
import math

import jax
import jax.numpy as jnp
from jax.experimental import pallas as pl
from jax.experimental.pallas import tpu as pltpu


def _cdiv(a, b):
    return -(-a // b)


def _round_up(a, m):
    return _cdiv(a, m) * m


# ----------------------------- sigmoid kernel ------------------------------ #

def _sigmoid_kernel(x_ref, o_ref):
    o_ref[...] = jax.nn.sigmoid(x_ref[...].astype(jnp.float32)).astype(o_ref.dtype)


_SIG_COLS = 1024      # 8 vregs wide -> lane-dense, unmasked stores
_SIG_MAX_ROWS = 512   # (512, 1024) f32 block = 2 MiB; in+out double-buffered = 8 MiB


def _sigmoid_flat(x1d):
    """Sigmoid over a flat 1-D array via a tiled, lane-dense Pallas kernel."""
    n = x1d.shape[0]
    if n == 0:
        return x1d
    rows = _cdiv(n, _SIG_COLS)
    tr = min(_SIG_MAX_ROWS, _round_up(rows, 8))
    grid_r = _cdiv(rows, tr)
    rows_p = grid_r * tr
    total = rows_p * _SIG_COLS
    if total != n:
        x1d = jnp.pad(x1d, (0, total - n))
    x2 = x1d.reshape(rows_p, _SIG_COLS)
    out = pl.pallas_call(
        _sigmoid_kernel,
        out_shape=jax.ShapeDtypeStruct((rows_p, _SIG_COLS), x2.dtype),
        grid=(grid_r,),
        in_specs=[pl.BlockSpec((tr, _SIG_COLS), lambda i: (i, 0))],
        out_specs=pl.BlockSpec((tr, _SIG_COLS), lambda i: (i, 0)),
        compiler_params=pltpu.CompilerParams(dimension_semantics=("parallel",)),
    )(x2)
    return out.reshape(-1)[:n]


def _sigmoid_cls(cls):
    """Apply sigmoid to every tensor in the dict; same-dtype tensors are fused
    into one pallas_call to amortize launch overhead."""
    if not cls:
        return dict(cls)
    groups = {}
    for k, v in cls.items():
        groups.setdefault(jnp.dtype(v.dtype), []).append(k)
    result = {}
    for _, keys in groups.items():
        flats = [cls[k].reshape(-1) for k in keys]
        sizes = [int(f.shape[0]) for f in flats]
        cat = flats[0] if len(flats) == 1 else jnp.concatenate(flats)
        res = _sigmoid_flat(cat)
        off = 0
        for k, sz in zip(keys, sizes):
            result[k] = res[off:off + sz].reshape(cls[k].shape)
            off += sz
    return {k: result[k] for k in cls}  # preserve original key order


# ------------------------- dilation (1 x kw maxpool) ------------------------ #

def _dilate_kernel(*refs, n, w, pad, shifts):
    in_refs = refs[:n]
    out_refs = refs[n:]
    _, pw = in_refs[0].shape
    dtype = in_refs[0].dtype

    if jnp.issubdtype(dtype, jnp.floating):
        neg = jnp.array(-jnp.inf, dtype=dtype)
    elif dtype == jnp.bool_:
        neg = jnp.array(False)
    else:
        neg = jnp.array(jnp.iinfo(dtype).min, dtype=dtype)

    # One (1, packed_W) column index; masks broadcast over rows in jnp.where.
    col_mod = jax.lax.broadcasted_iota(jnp.int32, (1, pw), 1) % w
    right_ok = {s: col_mod < (w - s) for s in set(shifts)}  # j+s stays in its W-segment
    left_ok = {s: col_mod >= s for s in set(shifts)}        # j-s stays in its W-segment

    def window_max(x):
        # Log-step (van Herk) max over [j-pad, j+pad], restricted to each
        # W-segment of the packed row (matches -inf padded MaxPool2d).
        if pad == 0:
            return x
        r = x  # running max over [j, j+cur-1] within j's segment
        l = x  # running max over [j-cur+1, j] within j's segment
        for s in shifts:
            sr = pltpu.roll(r, shift=(-s) % pw, axis=1)   # sr[j] = r[j+s]
            r = jnp.maximum(r, jnp.where(right_ok[s], sr, neg))
            sl = pltpu.roll(l, shift=s % pw, axis=1)      # sl[j] = l[j-s]
            l = jnp.maximum(l, jnp.where(left_ok[s], sl, neg))
        return jnp.maximum(r, l)

    for x_ref, o_ref in zip(in_refs, out_refs):
        o_ref[...] = window_max(x_ref[...]).astype(o_ref.dtype)


_VMEM_BUDGET_BYTES = 16 * 1024 * 1024  # ~half of the v7x scoped-VMEM default


def _dilate_many(xs, max_pool):
    """Sliding max of width kw along the last axis of each array in `xs`
    (all same shape/dtype), processed by a single pallas_call."""
    kh, kw = int(max_pool[0]), int(max_pool[1])
    if kh != 1:
        # TODO(synk): generalize to kh > 1 (needs a sliding max over H as well).
        raise NotImplementedError("only kernel height 1 supported (default [1, 7])")
    if kw % 2 != 1:
        # even kw with ceil_mode=True changes the output width (W+1): unsupported
        raise NotImplementedError("only odd kernel widths supported")
    pad = kw // 2

    shape = xs[0].shape
    dtype = xs[0].dtype
    for x in xs:
        assert x.shape == shape and x.dtype == dtype
    n = len(xs)

    w = int(shape[-1])
    rows = int(math.prod(shape[:-1]))

    # Pack g consecutive rows per vreg row so the lane axis is a multiple of 128.
    g = 128 // math.gcd(w, 128)
    packed_w = g * w
    itemsize = jnp.dtype(dtype).itemsize

    # Row tile: as large as the double-buffered in+out budget allows.
    block_budget = _VMEM_BUDGET_BYTES // (4 * n)  # 2 (dbl-buf) * 2 (in+out) * n arrays
    tr_target = max(8, (block_budget // (packed_w * itemsize)) // 8 * 8)

    packed_rows0 = _cdiv(rows, g)
    nblocks = max(1, _cdiv(packed_rows0, tr_target))
    if packed_rows0 >= 1024:  # keep >= 8 grid steps for multi-TC chips (v7x)
        nblocks = max(nblocks, 8)
    nblocks = min(nblocks, _cdiv(packed_rows0, 8))
    tr = _round_up(_cdiv(packed_rows0, nblocks), 8)
    grid_r = _cdiv(packed_rows0, tr)
    packed_rows = grid_r * tr
    rows_p = packed_rows * g

    prepared = []
    for x in xs:
        x2 = x.reshape(rows, w)
        if rows_p != rows:
            x2 = jnp.pad(x2, ((0, rows_p - rows), (0, 0)))
        prepared.append(x2.reshape(packed_rows, packed_w))

    # Log-step shift schedule building the one-sided window of size pad + 1.
    shifts = []
    cur = 1
    while cur < pad + 1:
        s = min(cur, pad + 1 - cur)
        shifts.append(s)
        cur += s

    kernel = functools.partial(_dilate_kernel, n=n, w=w, pad=pad, shifts=tuple(shifts))
    outs = pl.pallas_call(
        kernel,
        out_shape=tuple(
            jax.ShapeDtypeStruct((packed_rows, packed_w), dtype) for _ in xs),
        grid=(grid_r,),
        in_specs=[pl.BlockSpec((tr, packed_w), lambda i: (i, 0)) for _ in xs],
        out_specs=tuple(pl.BlockSpec((tr, packed_w), lambda i: (i, 0)) for _ in xs),
        compiler_params=pltpu.CompilerParams(dimension_semantics=("parallel",)),
    )(*prepared)
    if not isinstance(outs, (list, tuple)):
        outs = (outs,)

    results = []
    for o in outs:
        o2 = o.reshape(rows_p, w)[:rows]
        results.append(o2.reshape(shape))
    return tuple(results)


def dilation_pallas(x, max_pool=(1, 7)):
    (res,) = _dilate_many((x,), max_pool)
    return res


# ----------------------------- module wrappers ------------------------------ #

class SigmoidPostProcess:
    def __call__(self, output, target):
        if 'cls' in output:
            output = dict(output)
            output['cls'] = _sigmoid_cls(output['cls'])
        return output, target


class DilateSigmoidPostProcess:
    def __init__(self, max_pool=(1, 7)):
        self.max_pool = tuple(int(v) for v in max_pool)

    def __call__(self, output, target):
        output, target = SigmoidPostProcess()(output, target)
        if 'seg' in target:
            output = dict(output)
            target = dict(target)
            o_seg = output['seg']
            t_seg = target['seg']
            if o_seg.shape == t_seg.shape and o_seg.dtype == t_seg.dtype:
                # single fused pallas_call for both seg maps
                o_d, t_d = _dilate_many((o_seg, t_seg), self.max_pool)
            else:
                o_d = dilation_pallas(o_seg, self.max_pool)
                t_d = dilation_pallas(t_seg, self.max_pool)
            output['seg'] = o_d
            target['seg'] = t_d
        return output, target


# --------------------------------- reference -------------------------------- #

def _dilation_ref(x, kh, kw):
    return jax.lax.reduce_window(
        x, -jnp.inf, jax.lax.max,
        window_dimensions=(1, 1, kh, kw),
        window_strides=(1, 1, 1, 1),
        padding=((0, 0), (0, 0),
                 (kh // 2, kh - 1 - kh // 2),
                 (kw // 2, kw - 1 - kw // 2)))


if __name__ == "__main__":
    key = jax.random.PRNGKey(0)
    k1, k2, k3, k4 = jax.random.split(key, 4)

    # Module has no learned parameters; max_pool=[1, 7] is the only config.
    output = {
        'cls': {
            'logits': jax.random.normal(k1, (2, 8, 16), jnp.float32),
            'aux': jax.random.normal(k2, (2, 16), jnp.float32),
        },
        'seg': jax.random.normal(k3, (2, 4, 16, 16), jnp.float32),
    }
    target = {
        'seg': (jax.random.uniform(k4, (2, 4, 16, 16)) > 0.5).astype(jnp.float32),
    }

    module = DilateSigmoidPostProcess(max_pool=[1, 7])
    out, tgt = module(output, target)
    jax.block_until_ready((out, tgt))

    # Correctness vs pure-JAX reference.
    for k, v in output['cls'].items():
        assert jnp.allclose(out['cls'][k], jax.nn.sigmoid(v), atol=1e-6), k
    assert jnp.allclose(out['seg'], _dilation_ref(output['seg'], 1, 7), atol=0), 'out seg'
    assert jnp.allclose(tgt['seg'], _dilation_ref(target['seg'], 1, 7), atol=0), 'tgt seg'

    print("KERNEL_OK")
</pallas_src>

<mosaic_0001>
module attributes {stable_mosaic.version = 11 : i64} {
  func.func @_sigmoid_kernel(%arg0: i32, %arg1: memref<8x1024xf32, #tpu.memory_space<vmem>>, %arg2: memref<8x1024xf32, #tpu.memory_space<vmem>>) attributes {dimension_semantics = [#tpu.dimension_semantics<parallel>], iteration_bounds = array<i64: 1>, scalar_prefetch = 0 : i64, scratch_operands = 0 : i64, tpu.core_type = #tpu.core_type<tc>, window_params = [{transform_indices = @transform_0, window_bounds = array<i64: 8, 1024>}, {transform_indices = @transform_1, window_bounds = array<i64: 8, 1024>}]} {
    %c0 = arith.constant 0 : index
    %c0_0 = arith.constant 0 : index
    %0 = vector.load %arg1[%c0, %c0_0] : memref<8x1024xf32, #tpu.memory_space<vmem>>, vector<8x1024xf32>
    %1 = arith.negf %0 : vector<8x1024xf32>
    %2 = math.exp %1 : vector<8x1024xf32>
    %cst = arith.constant 1.000000e+00 : f32
    %3 = vector.broadcast %cst : f32 to vector<8x1024xf32>
    %4 = arith.addf %3, %2 : vector<8x1024xf32>
    %5 = arith.divf %3, %4 : vector<8x1024xf32>
    %c0_1 = arith.constant 0 : index
    %c0_2 = arith.constant 0 : index
    %6 = vector.load %arg2[%c0_1, %c0_2] : memref<8x1024xf32, #tpu.memory_space<vmem>>, vector<8x1024xf32>
    tpu.vector_store %arg2[%c0_1, %c0_2], %5 {strides = array<i32>} : memref<8x1024xf32, #tpu.memory_space<vmem>>, vector<8x1024xf32>,
    return
  }
  func.func @transform_0(%arg0: i32) -> (i32, i32) {
    %c0_i32 = arith.constant 0 : i32
    %c0_i32_0 = arith.constant 0 : i32
    return %arg0, %c0_i32 : i32, i32
  }
  func.func @transform_1(%arg0: i32) -> (i32, i32) {
    %c0_i32 = arith.constant 0 : i32
    %c0_i32_0 = arith.constant 0 : i32
    return %arg0, %c0_i32 : i32, i32
  }
}

</mosaic_0001>

<llo_original>
// kernel: tpu_custom_call.1
$region0: #{tpu_custom_call.1}
  #allocation0 [shape = 'u32[]', space=smem, size = 0x4, offset = 0x4, fixed_abs, tag = 'smem constant byte address 0x4 - core index']
  #allocation1 [shape = 'u32[144,128]{1,0:T(1,128)}', space=vmem, size = 0x12000, scoped, tag = 'internal scratch']
  %s0 = inlined_call_operand.hbm [shape: f32[8,1024], index: 0, kind: input, shape index: {}]
  %s1 = inlined_call_operand.hbm [shape: f32[8,1024], index: 1, kind: output, shape index: {}]
  %s2 = sld [smem:[#allocation0]]
  $region18: #{tpu_custom_call.1} parent=0
    _
  %s4 = ssub.s32 1, %s2
  %s5 = scalar_select 0, %s4, %s2
  $region1: #{tpu_custom_call.1} parent=0
    #allocation2 [shape = 'u8[32768]{0}', space=vmem, size = 0x8000, scoped, tag = 'input window, operand 0, single buffered']
    #allocation3 [shape = 's32[1]{0}', space=sflag, size = 0x4, scoped, tag = 'scoped memory for tpu_custom_call.1']
    #allocation4 [shape = 's32[1]{0}', space=sflag, size = 0x4, scoped, tag = 'scoped memory for tpu_custom_call.1']
    #allocation5 [shape = 'u8[32768]{0}', space=vmem, size = 0x8000, scoped, tag = 'output window, operand 0, single buffered']
    %6 = vsyncpa [#allocation3], 0
    %7 = vsyncpa [#allocation4], 0
    // Predicated region
    $region2: #{tpu_custom_call.1} parent=1 // pred_check
      _
    $region3: #{tpu_custom_call.1} parent=1 // pred_check_branch
      %9 = sbr.rel (0) target = $region5
    $region4: #{tpu_custom_call.1} parent=1 // pred_region
      %s11 = ssub.s32 1024, 1024
      %12 = vsyncadd [#allocation3], %s11
      %s14 = sshll.u32 [#allocation2], 4
      %s15 = int_to_ptr.vmem [resolvable:$true] %s14
      %17 = dma.hbm_to_vmem [thread:$0]  %s0, 1024, %s15, [#allocation3]
    $region5: #{tpu_custom_call.1} parent=1 // pred_fallthru
      _
    // Predicated region
    $region6: #{tpu_custom_call.1} parent=1 // pred_check
      _
    $region7: #{tpu_custom_call.1} parent=1 // pred_check_branch
      %19 = sbr.rel (0) target = $region9
    $region8: #{tpu_custom_call.1} parent=1 // pred_region
      %20 = dma.done [#allocation3], 1024
    $region9: #{tpu_custom_call.1} parent=1 // pred_fallthru
      _
    %v21 = vld [vmem:[#allocation2] sm:$0xff]
    %v22 = vld [vmem:[#allocation2 + $0x8] sm:$0xff]
    %v23 = vld [vmem:[#allocation2 + $0x10] sm:$0xff]
    %v24 = vld [vmem:[#allocation2 + $0x18] sm:$0xff]
    %v25 = vld [vmem:[#allocation2 + $0x20] sm:$0xff]
    %v26 = vld [vmem:[#allocation2 + $0x28] sm:$0xff]
    %v27 = vld [vmem:[#allocation2 + $0x30] sm:$0xff]
    %v28 = vld [vmem:[#allocation2 + $0x38] sm:$0xff]
    %v29 = vxor.u32 %v21, 2147483648
    %v30 = vxor.u32 %v22, 2147483648
    %v31 = vxor.u32 %v23, 2147483648
    %v32 = vxor.u32 %v24, 2147483648
    %v33 = vxor.u32 %v25, 2147483648
    %v34 = vxor.u32 %v26, 2147483648
    %v35 = vxor.u32 %v27, 2147483648
    %v36 = vxor.u32 %v28, 2147483648
    %v37 = vmul.f32 %v29, 1.442695
    %v38 = vpow.pop %v37
    %v39 = vmul.f32 %v30, 1.442695
    %v40 = vpow.pop %v39
    %v41 = vmul.f32 %v31, 1.442695
    %v42 = vpow.pop %v41
    %v43 = vmul.f32 %v32, 1.442695
    %v44 = vpow.pop %v43
    %v45 = vmul.f32 %v33, 1.442695
    %v46 = vpow.pop %v45
    %v47 = vmul.f32 %v34, 1.442695
    %v48 = vpow.pop %v47
    %v49 = vmul.f32 %v35, 1.442695
    %v50 = vpow.pop %v49
    %v51 = vmul.f32 %v36, 1.442695
    %v52 = vpow.pop %v51
    %v53 = vadd.f32 %v38, 1.0
    %v54 = vadd.f32 %v40, 1.0
    %v55 = vadd.f32 %v42, 1.0
    %v56 = vadd.f32 %v44, 1.0
    %v57 = vadd.f32 %v46, 1.0
    %v58 = vadd.f32 %v48, 1.0
    %v59 = vadd.f32 %v50, 1.0
    %v60 = vadd.f32 %v52, 1.0
    %v61 = vrcp.pop %v53
    %v62 = vmul.f32 1.0, %v61
    %v63 = vrcp.pop %v54
    %v64 = vmul.f32 1.0, %v63
    %v65 = vrcp.pop %v55
    %v66 = vmul.f32 1.0, %v65
    %v67 = vrcp.pop %v56
    %v68 = vmul.f32 1.0, %v67
    %v69 = vrcp.pop %v57
    %v70 = vmul.f32 1.0, %v69
    %v71 = vrcp.pop %v58
    %v72 = vmul.f32 1.0, %v71
    %v73 = vrcp.pop %v59
    %v74 = vmul.f32 1.0, %v73
    %v75 = vrcp.pop %v60
    %v76 = vmul.f32 1.0, %v75
    %77 = vst [vmem:[#allocation5] sm:$0xff] %v62
    %78 = vst [vmem:[#allocation5 + $0x8] sm:$0xff] %v64
    %79 = vst [vmem:[#allocation5 + $0x10] sm:$0xff] %v66
    %80 = vst [vmem:[#allocation5 + $0x18] sm:$0xff] %v68
    %81 = vst [vmem:[#allocation5 + $0x20] sm:$0xff] %v70
    %82 = vst [vmem:[#allocation5 + $0x28] sm:$0xff] %v72
    %83 = vst [vmem:[#allocation5 + $0x30] sm:$0xff] %v74
    %84 = vst [vmem:[#allocation5 + $0x38] sm:$0xff] %v76
    // Predicated region
    $region10: #{tpu_custom_call.1} parent=1 // pred_check
      _
    $region11: #{tpu_custom_call.1} parent=1 // pred_check_branch
      %86 = sbr.rel (0) target = $region13
    $region12: #{tpu_custom_call.1} parent=1 // pred_region
      %s88 = ssub.s32 1024, 1024
      %89 = vsyncadd [#allocation4], %s88
      %s91 = sshll.u32 [#allocation5], 4
      %s92 = int_to_ptr.vmem [resolvable:$true] %s91
      %94 = dma.vmem_to_hbm [thread:$0]  %s92, 1024, %s1, [#allocation4]
    $region13: #{tpu_custom_call.1} parent=1 // pred_fallthru
      _
    // Predicated region
    $region14: #{tpu_custom_call.1} parent=1 // pred_check
      _
    $region15: #{tpu_custom_call.1} parent=1 // pred_check_branch
      %96 = sbr.rel (0) target = $region17
    $region16: #{tpu_custom_call.1} parent=1 // pred_region
      %97 = dma.done [#allocation4], 1024
    $region17: #{tpu_custom_call.1} parent=1 // pred_fallthru
      _
    %98 = vsyncpa [#allocation3], 1
    %99 = vsyncpa [#allocation4], 1

</llo_original>
